<compile_context>
chip_gen: v7x
topology: tpu7x:2x2x1
jax: 0.10.0
libtpu: 0.0.40
codegen_flags: <defaults>
</compile_context>

<pallas_src>
import functools

import jax
import jax.numpy as jnp
from jax.experimental import pallas as pl
from jax.experimental.pallas import tpu as pltpu


# ----------------------------------------------------------------------------
# Kernels
# ----------------------------------------------------------------------------

def _silu_f32(h, approx):
    # Keep approx off for realistic H: EUP work is hidden behind MXU/DMA anyway.
    if approx:
        return h * pl.reciprocal(1.0 + jnp.exp(-h), approx=True)
    return h * jax.nn.sigmoid(h)


def _resblock_full_kernel(x_ref, w_ref, b_ref, o_ref, *, approx_silu):
    """Path A: whole W^T resident in VMEM; 1-D grid over batch tiles."""
    x = x_ref[...]                                               # (tb, H), input dtype
    h = jnp.dot(x.astype(w_ref.dtype), w_ref[...],
                preferred_element_type=jnp.float32)              # MXU, f32 accum
    h = h + b_ref[...].astype(jnp.float32)                       # (1, H) broadcast
    o_ref[...] = (x.astype(jnp.float32) + _silu_f32(h, approx_silu)).astype(o_ref.dtype)


def _resblock_slab_kernel(x_ref, w_ref, b_ref, o_ref, *, tile_n, approx_silu):
    """Path B: (H, tile_n) weight slab resident across the inner batch sweep.

    grid = (n_j, n_i) with the output-column axis j OUTER and the batch axis i
    INNER: the weight slab's index_map depends only on j, so it is loaded once
    per j and reused for every batch tile; x is the streamed operand.
    """
    j = pl.program_id(0)
    if tile_n % 128 == 0:
        col = pl.multiple_of(j * tile_n, 128)    # 128-aligned -> cheap lane view
    else:
        col = j * tile_n                         # only when tile_n == H (single slab)

    x = x_ref[...]                                               # (tb, H), fresh block
    h = jnp.dot(x.astype(w_ref.dtype), w_ref[...],
                preferred_element_type=jnp.float32)              # (tb, tn) f32
    h = h + b_ref[...].astype(jnp.float32)

    # Residual window sliced from the already-resident x block: no second HBM
    # read of x, no extra DMA stream.
    x_res = x_ref[:, pl.ds(col, tile_n)]
    o_ref[...] = (x_res.astype(jnp.float32) + _silu_f32(h, approx_silu)).astype(o_ref.dtype)


# ----------------------------------------------------------------------------
# One-time parameter preprocessing (PyTorch nn.Linear layout -> kernel layout)
# ----------------------------------------------------------------------------

def prepare_resblock_params(weight, bias, *, matmul_dtype=jnp.bfloat16):
    """weight: [H_out, H_in] -> W^T [H_in, H_out] in the MXU input dtype.
    bias: [H] -> [1, H] kept f32 for an exact epilogue add.
    Use matmul_dtype=jnp.float32 for bit-closer parity with fp32 PyTorch."""
    H = bias.shape[0]
    assert weight.shape == (H, H)
    wt = jnp.asarray(weight).T.astype(matmul_dtype)
    b2 = jnp.asarray(bias).reshape(1, H).astype(jnp.float32)
    return wt, b2


# ----------------------------------------------------------------------------
# Wrapper
# ----------------------------------------------------------------------------

def _vmem_info():
    """(budget, physical) VMEM bytes for the local TPU generation."""
    phys = 64 << 20  # conservative default = v7x per-TC VMEM
    get_info = getattr(pltpu, "get_tpu_info", None)
    if get_info is not None:
        try:
            cap = getattr(get_info(), "vmem_capacity_bytes", None)
            if cap:
                phys = int(cap)
        except Exception:
            pass
    budget = (phys * 85) // 100  # headroom for Mosaic internal scratch
    return budget, phys


def _pick_tile_n(H):
    for tn in (512, 256, 128):
        if H % tn == 0:
            return tn
    return H  # small / odd H: single full-width slab


def resblock(x, wt, b2, *, tile_b=None, tile_n=None, weight_resident=None,
             approx_silu=False):
    """ResBlock forward: x + SiLU(x @ W^T + b).

    x:  [B, H]   (residual and output keep this dtype / full precision)
    wt: [H, H]   pre-transposed weight from prepare_resblock_params
    b2: [1, H]   f32 bias
    """
    B, H = x.shape
    assert wt.shape == (H, H) and b2.shape == (1, H)

    xb, wb, bb, ob = (x.dtype.itemsize, wt.dtype.itemsize,
                      b2.dtype.itemsize, x.dtype.itemsize)
    budget, phys = _vmem_info()

    user_tile_b = tile_b is not None
    if tile_b is None:
        tile_b = B if B <= 256 else 256

    def est_full(tb):
        # x block + whole W^T + bias + out block, all double-buffered.
        return 2 * (tb * H * xb + H * H * wb + H * bb + tb * H * ob)

    def est_slab(tb, tn):
        return 2 * (tb * H * xb + H * tn * wb + tn * bb + tb * tn * ob)

    if weight_resident is None:
        weight_resident = est_full(tile_b) <= budget

    if weight_resident:
        # ---------- Path A: whole W^T VMEM-resident, 1-D batch grid ----------
        est = est_full(tile_b)
        grid = (pl.cdiv(B, tile_b),)
        kernel = functools.partial(_resblock_full_kernel, approx_silu=approx_silu)
        in_specs = [
            pl.BlockSpec((tile_b, H), lambda i: (i, 0)),   # x: streamed per batch tile
            pl.BlockSpec((H, H), lambda i: (0, 0)),        # W^T: resident, loaded once
            pl.BlockSpec((1, H), lambda i: (0, 0)),        # bias: resident
        ]
        out_specs = pl.BlockSpec((tile_b, H), lambda i: (i, 0))
        dim_sem = ("parallel",)
    else:
        # ---------- Path B: (H, tile_n) weight slab resident over batch ------
        user_tile_n = tile_n is not None
        if tile_n is None:
            tile_n = _pick_tile_n(H)
        if not (user_tile_b or user_tile_n):
            # Fit the generation's VMEM budget: halve tile_b first (does not
            # change HBM traffic), only then tile_n (doubles the x stream).
            while est_slab(tile_b, tile_n) > budget:
                if tile_b > 128:
                    tile_b = max(128, (tile_b // 2) // 8 * 8)
                elif tile_n > 128 and H % (tile_n // 2) == 0:
                    tile_n //= 2
                elif tile_b > 8:
                    tile_b = max(8, (tile_b // 2) // 8 * 8)
                else:
                    break
        est = est_slab(tile_b, tile_n)
        grid = (pl.cdiv(H, tile_n), pl.cdiv(B, tile_b))    # j outer, i inner
        kernel = functools.partial(_resblock_slab_kernel, tile_n=tile_n,
                                   approx_silu=approx_silu)
        in_specs = [
            pl.BlockSpec((tile_b, H), lambda j, i: (i, 0)),     # x: streamed each step
            pl.BlockSpec((H, tile_n), lambda j, i: (0, j)),     # W^T slab: resident over i
            pl.BlockSpec((1, tile_n), lambda j, i: (0, j)),     # bias slab
        ]
        out_specs = pl.BlockSpec((tile_b, tile_n), lambda j, i: (i, j))
        # j "parallel": on v7x megacore the sharded axis is the output-column
        # axis, so each TensorCore streams disjoint weight columns; i is
        # sequential ("arbitrary").
        dim_sem = ("parallel", "arbitrary")

    # Scoped-VMEM limit: cover the footprint (+ headroom) but never request
    # more than physical VMEM (v7x has only 64 MiB; v5e default scoped is 16).
    vmem_limit = int(min(max(est + (8 << 20), 32 << 20), (phys * 95) // 100))

    return pl.pallas_call(
        kernel,
        out_shape=jax.ShapeDtypeStruct((B, H), x.dtype),
        grid_spec=pltpu.PrefetchScalarGridSpec(
            num_scalar_prefetch=0,
            grid=grid,
            in_specs=in_specs,
            out_specs=out_specs,
        ),
        compiler_params=pltpu.CompilerParams(
            dimension_semantics=dim_sem,
            vmem_limit_bytes=vmem_limit,
        ),
    )(x, wt, b2)


# ----------------------------------------------------------------------------
# Self-test
# ----------------------------------------------------------------------------

if __name__ == "__main__":
    key = jax.random.PRNGKey(0)
    kx, kw, kb, kx2, kw2, kb2 = jax.random.split(key, 6)

    def ref_forward(x, wt_stored, b):
        # Reference uses the same operand rounding the kernel feeds the MXU.
        xq = x.astype(wt_stored.dtype).astype(jnp.float32)
        wq = wt_stored.astype(jnp.float32)
        h = jnp.dot(xq, wq, precision=jax.lax.Precision.HIGHEST) + b
        return x + h * jax.nn.sigmoid(h)

    # --- Small shape consistent with the module (batch=8, hidden=32). ---
    B, H = 8, 32
    x = jax.random.normal(kx, (B, H), dtype=jnp.float32)
    # The module zero-initializes the weight; use a nonzero weight here so the
    # matmul / W^T layout path is actually exercised.
    weight = jax.random.normal(kw, (H, H), dtype=jnp.float32) * 0.1
    bound = 1.0 / jnp.sqrt(H)
    bias = jax.random.uniform(kb, (H,), minval=-bound, maxval=bound,
                              dtype=jnp.float32)

    # 1) Default bf16-matmul, full-weight-resident path.
    wt_bf16, b2 = prepare_resblock_params(weight, bias)
    out = resblock(x, wt_bf16, b2)
    jax.block_until_ready(out)
    assert jnp.allclose(out, ref_forward(x, wt_bf16, bias), atol=2e-3, rtol=2e-3), \
        "bf16 full-resident path mismatch vs reference"

    # 2) f32-matmul path.
    wt_f32, _ = prepare_resblock_params(weight, bias, matmul_dtype=jnp.float32)
    out32 = resblock(x, wt_f32, b2)
    jax.block_until_ready(out32)
    assert jnp.allclose(out32, ref_forward(x, wt_f32, bias), atol=1e-3, rtol=1e-3), \
        "f32 path mismatch vs reference"

    # 3) Zero-initialized weight (the module's actual init): out == x + SiLU(b).
    wt0, b20 = prepare_resblock_params(jnp.zeros_like(weight), bias)
    out0 = resblock(x, wt0, b20)
    jax.block_until_ready(out0)
    h0 = jnp.broadcast_to(bias, x.shape)
    assert jnp.allclose(out0, x + h0 * jax.nn.sigmoid(h0), atol=1e-5, rtol=1e-5), \
        "zero-weight path mismatch vs reference"

    # 4) Exercise the large-H column-slab path (weight slab resident, j-outer
    #    grid, residual sliced from the resident x block) at a small shape.
    B2, H2 = 16, 256
    x2 = jax.random.normal(kx2, (B2, H2), dtype=jnp.float32)
    w2 = jax.random.normal(kw2, (H2, H2), dtype=jnp.float32) * 0.05
    b_2 = jax.random.uniform(kb2, (H2,), minval=-0.05, maxval=0.05,
                             dtype=jnp.float32)
    wt2, b22 = prepare_resblock_params(w2, b_2)
    out2 = resblock(x2, wt2, b22, tile_b=8, tile_n=128, weight_resident=False)
    jax.block_until_ready(out2)
    assert jnp.allclose(out2, ref_forward(x2, wt2, b_2), atol=2e-3, rtol=2e-3), \
        "column-slab path mismatch vs reference"

    print("KERNEL_OK")
</pallas_src>

<mosaic_0001>
module attributes {stable_mosaic.version = 11 : i64} {
  func.func @_resblock_full_kernel(%arg0: i32, %arg1: memref<8x32xf32, #tpu.memory_space<vmem>>, %arg2: memref<32x32xbf16, #tpu.memory_space<vmem>>, %arg3: memref<1x32xf32, #tpu.memory_space<vmem>>, %arg4: memref<8x32xf32, #tpu.memory_space<vmem>>) attributes {dimension_semantics = [#tpu.dimension_semantics<parallel>], iteration_bounds = array<i64: 1>, scalar_prefetch = 0 : i64, scratch_operands = 0 : i64, tpu.core_type = #tpu.core_type<tc>, window_params = [{transform_indices = @transform_0, window_bounds = array<i64: 8, 32>}, {pipeline_mode = #tpu.pipeline_mode<synchronous>, transform_indices = @transform_1, window_bounds = array<i64: 32, 32>}, {pipeline_mode = #tpu.pipeline_mode<synchronous>, transform_indices = @transform_2, window_bounds = array<i64: 1, 32>}, {transform_indices = @transform_3, window_bounds = array<i64: 8, 32>}]} {
    %c0 = arith.constant 0 : index
    %c0_0 = arith.constant 0 : index
    %0 = vector.load %arg1[%c0, %c0_0] : memref<8x32xf32, #tpu.memory_space<vmem>>, vector<8x32xf32>
    %1 = arith.truncf %0 : vector<8x32xf32> to vector<8x32xbf16>
    %c0_1 = arith.constant 0 : index
    %c0_2 = arith.constant 0 : index
    %2 = vector.load %arg2[%c0_1, %c0_2] : memref<32x32xbf16, #tpu.memory_space<vmem>>, vector<32x32xbf16>
    %cst = arith.constant dense<0.000000e+00> : vector<8x32xf32>
    %3 = tpu.matmul %1, %2, %cst {dimension_numbers = #tpu.dot_dimension_numbers<[1], [0], [0], [1], [0, 0, 1, 1], [], []>} : vector<8x32xbf16>, vector<32x32xbf16>, vector<8x32xf32> -> vector<8x32xf32>
    %c0_3 = arith.constant 0 : index
    %c0_4 = arith.constant 0 : index
    %4 = vector.load %arg3[%c0_3, %c0_4] : memref<1x32xf32, #tpu.memory_space<vmem>>, vector<1x32xf32>
    %5 = vector.broadcast %4 : vector<1x32xf32> to vector<8x32xf32>
    %6 = arith.addf %3, %5 : vector<8x32xf32>
    %7 = arith.negf %6 : vector<8x32xf32>
    %8 = math.exp %7 : vector<8x32xf32>
    %cst_5 = arith.constant 1.000000e+00 : f32
    %9 = vector.broadcast %cst_5 : f32 to vector<8x32xf32>
    %10 = arith.addf %9, %8 : vector<8x32xf32>
    %11 = arith.divf %9, %10 : vector<8x32xf32>
    %12 = arith.mulf %6, %11 : vector<8x32xf32>
    %13 = arith.addf %0, %12 : vector<8x32xf32>
    %c0_6 = arith.constant 0 : index
    %c0_7 = arith.constant 0 : index
    %14 = vector.load %arg4[%c0_6, %c0_7] : memref<8x32xf32, #tpu.memory_space<vmem>>, vector<8x32xf32>
    tpu.vector_store %arg4[%c0_6, %c0_7], %13 {strides = array<i32>} : memref<8x32xf32, #tpu.memory_space<vmem>>, vector<8x32xf32>,
    return
  }
  func.func @transform_0(%arg0: i32) -> (i32, i32) {
    %c0_i32 = arith.constant 0 : i32
    %c0_i32_0 = arith.constant 0 : i32
    return %arg0, %c0_i32 : i32, i32
  }
  func.func @transform_1(%arg0: i32) -> (i32, i32) {
    %c0_i32 = arith.constant 0 : i32
    %c0_i32_0 = arith.constant 0 : i32
    %c0_i32_1 = arith.constant 0 : i32
    return %c0_i32, %c0_i32_0 : i32, i32
  }
  func.func @transform_2(%arg0: i32) -> (i32, i32) {
    %c0_i32 = arith.constant 0 : i32
    %c0_i32_0 = arith.constant 0 : i32
    %c0_i32_1 = arith.constant 0 : i32
    return %c0_i32, %c0_i32_0 : i32, i32
  }
  func.func @transform_3(%arg0: i32) -> (i32, i32) {
    %c0_i32 = arith.constant 0 : i32
    %c0_i32_0 = arith.constant 0 : i32
    return %arg0, %c0_i32 : i32, i32
  }
}

</mosaic_0001>

<llo_original>
// kernel: tpu_custom_call.1
$region0: #{tpu_custom_call.1}
  #allocation0 [shape = 'u32[]', space=smem, size = 0x4, offset = 0x4, fixed_abs, tag = 'smem constant byte address 0x4 - core index']
  #allocation1 [shape = 'u32[144,128]{1,0:T(1,128)}', space=vmem, size = 0x12000, scoped, tag = 'internal scratch']
  %s0 = inlined_call_operand.hbm [shape: f32[8,32], index: 0, kind: input, shape index: {}]
  %s1 = inlined_call_operand.hbm [shape: bf16[32,32], index: 1, kind: input, shape index: {}]
  %s2 = inlined_call_operand.vmem [shape: f32[1,32], index: 2, kind: input, shape index: {}]
  %s3 = inlined_call_operand.hbm [shape: f32[8,32], index: 3, kind: output, shape index: {}]
  %s4 = sld [smem:[#allocation0]]
  $region30: #{tpu_custom_call.1} parent=0
    _
  %s6 = ssub.s32 1, %s4
  %s7 = scalar_select 0, %s6, %s4
  $region1: #{tpu_custom_call.1} parent=0
    #allocation2 [shape = 'u8[4096]{0}', space=vmem, size = 0x1000, scoped, tag = 'input window, operand 0, single buffered']
    #allocation3 [shape = 's32[1]{0}', space=sflag, size = 0x4, scoped, tag = 'scoped memory for tpu_custom_call.1']
    #allocation4 [shape = 's32[1]{0}', space=sflag, size = 0x4, scoped, tag = 'scoped memory for tpu_custom_call.1']
    #allocation5 [shape = 'u8[8192]{0}', space=vmem, size = 0x2000, scoped, tag = 'input window, operand 1, single buffered']
    #allocation6 [shape = 's32[1]{0}', space=sflag, size = 0x4, scoped, tag = 'scoped memory for tpu_custom_call.1']
    #allocation7 [shape = 'u8[4096]{0}', space=vmem, size = 0x1000, scoped, tag = 'output window, operand 0, single buffered']
    %8 = vsyncpa [#allocation3], 0
    %9 = vsyncpa [#allocation6], 0
    %10 = vsyncpa [#allocation4], 0
    // Predicated region
    $region2: #{tpu_custom_call.1} parent=1 // pred_check
      _
    $region3: #{tpu_custom_call.1} parent=1 // pred_check_branch
      %12 = sbr.rel (0) target = $region5
    $region4: #{tpu_custom_call.1} parent=1 // pred_region
      %s14 = ssub.s32 128, 128
      %15 = vsyncadd [#allocation3], %s14
      %s17 = sshll.u32 [#allocation2], 4
      %s18 = int_to_ptr.vmem [resolvable:$true] %s17
      %20 = dma.hbm_to_vmem [thread:$0]  %s0, 128, %s18, [#allocation3]
    $region5: #{tpu_custom_call.1} parent=1 // pred_fallthru
      _
    // Predicated region
    $region6: #{tpu_custom_call.1} parent=1 // pred_check
      _
    $region7: #{tpu_custom_call.1} parent=1 // pred_check_branch
      %22 = sbr.rel (0) target = $region9
    $region8: #{tpu_custom_call.1} parent=1 // pred_region
      %s24 = ssub.s32 256, 256
      %25 = vsyncadd [#allocation6], %s24
      %s26 = sshll.u32 [#allocation5], 4
      %s27 = int_to_ptr.vmem [resolvable:$true] %s26
      %32 = dma.hbm_to_vmem [thread:$0]  %s1, 256, %s27, [#allocation6], 64, 64, 4
    $region9: #{tpu_custom_call.1} parent=1 // pred_fallthru
      _
    // Predicated region
    $region10: #{tpu_custom_call.1} parent=1 // pred_check
      _
    $region11: #{tpu_custom_call.1} parent=1 // pred_check_branch
      %34 = sbr.rel (0) target = $region13
    $region12: #{tpu_custom_call.1} parent=1 // pred_region
      _
    $region13: #{tpu_custom_call.1} parent=1 // pred_fallthru
      _
    // Predicated region
    $region14: #{tpu_custom_call.1} parent=1 // pred_check
      _
    $region15: #{tpu_custom_call.1} parent=1 // pred_check_branch
      %36 = sbr.rel (0) target = $region17
    $region16: #{tpu_custom_call.1} parent=1 // pred_region
      %37 = dma.done [#allocation3], 128
    $region17: #{tpu_custom_call.1} parent=1 // pred_fallthru
      _
    // Predicated region
    $region18: #{tpu_custom_call.1} parent=1 // pred_check
      _
    $region19: #{tpu_custom_call.1} parent=1 // pred_check_branch
      %39 = sbr.rel (0) target = $region21
    $region20: #{tpu_custom_call.1} parent=1 // pred_region
      %40 = dma.done [#allocation6], 256
    $region21: #{tpu_custom_call.1} parent=1 // pred_fallthru
      _
    %v42 = vld [vmem:[#allocation2] sm:$0xff]
    %v43 = vpack.c.bf16 %v42, %v42
    %v44 = vld [vmem:[#allocation5] sm:$0xf]
    %v45 = vld [vmem:[#allocation5 + $0x4] sm:$0xf]
    %v46 = vld [vmem:[#allocation5 + $0x8] sm:$0xf]
    %v47 = vld [vmem:[#allocation5 + $0xc] sm:$0xf]
    %v48 = vld [vmem:[%s2] sm:$0x1]
    %v50 = vlaneseq
    %v51 = vshrl.u32 %v50, 7
    %v52 = vsub.s32 0, %v51
    %v53 = vrot.slane %v48, %v52
    %v59 = vunpack.c.l.b16 %v44
    %v60 = vunpack.c.l.b16 %v45
    %v61 = vunpack.c.l.b16 %v46
    %v62 = vunpack.c.l.b16 %v47
    %v63 = vpack.c.b16 %v60, %v59
    %v64 = vpack.c.b16 %v62, %v61
    %vm67 = vcmask 261120
    %v69 = vsel %vm67, %v43, 0
    %71 = vmatprep.subr.bf16.mxu0 0
    %72 = vmatpush1.bf16.msra.mxu0 %v63
    %73 = vmatprep.subr.bf16.mxu0 0
    %74 = vmatpush1.bf16.msra.mxu0 %v64
    %75 = vmatprep.subr.bf16.mxu0 0
    %76 = vmatpush1.bf16.msra.mxu0 0
    %77 = vmatprep.subr.bf16.mxu0 0
    %78 = vmatpush1.bf16.msra.mxu0 0
    %79 = vmatprep.subr.bf16.mxu0 0
    %80 = vmatpush1.bf16.msra.mxu0 0
    %81 = vmatprep.subr.bf16.mxu0 0
    %82 = vmatpush1.bf16.msra.mxu0 0
    %83 = vmatprep.subr.bf16.mxu0 0
    %84 = vmatpush1.bf16.msra.mxu0 0
    %85 = vmatprep.subr.bf16.mxu0 0
    %86 = vmatpush1.bf16.msra.mxu0 0
    %87 = vmatprep.subr.bf16.mxu0 0
    %88 = vmatpush1.bf16.msra.mxu0 0
    %89 = vmatprep.subr.bf16.mxu0 0
    %90 = vmatpush1.bf16.msra.mxu0 0
    %91 = vmatprep.subr.bf16.mxu0 0
    %92 = vmatpush1.bf16.msra.mxu0 0
    %93 = vmatprep.subr.bf16.mxu0 0
    %94 = vmatpush1.bf16.msra.mxu0 0
    %95 = vmatprep.subr.bf16.mxu0 0
    %96 = vmatpush1.bf16.msra.mxu0 0
    %97 = vmatprep.subr.bf16.mxu0 0
    %98 = vmatpush1.bf16.msra.mxu0 0
    %99 = vmatprep.subr.bf16.mxu0 0
    %100 = vmatpush1.bf16.msra.mxu0 0
    %101 = vmatprep.subr.bf16.mxu0 0
    %102 = vmatpush1.bf16.msra.mxu0 0
    %103 = vmatprep.mubr.bf16.mxu0 0
    %104 = vmatmul.mubr.bf16.gmra.mrb[0].mxu0 %v69
    %v105 = vpop.f32.mrb[0].mxu0
    %v106 = vadd.f32 %v53, %v105
    %v107 = vpop.f32.mrb[0].mxu0
    %v108 = vpop.f32.mrb[0].mxu0
    %v109 = vpop.f32.mrb[0].mxu0
    %110 = vdwg.mxu0
    %v111 = vxor.u32 %v106, 2147483648
    %v112 = vmul.f32 %v111, 1.442695
    %v113 = vpow.pop %v112
    %v114 = vadd.f32 %v113, 1.0
    %v115 = vrcp.pop %v114
    %v116 = vmul.f32 1.0, %v115
    %v117 = vmul.f32 %v106, %v116
    %v118 = vadd.f32 %v42, %v117
    %119 = vst.msk [vmem:[#allocation7] sm:$0xff] %vm67, %v118
    // Predicated region
    $region22: #{tpu_custom_call.1} parent=1 // pred_check
      _
    $region23: #{tpu_custom_call.1} parent=1 // pred_check_branch
      %121 = sbr.rel (0) target = $region25
    $region24: #{tpu_custom_call.1} parent=1 // pred_region
      %s123 = ssub.s32 128, 128
      %124 = vsyncadd [#allocation4], %s123
      %s126 = sshll.u32 [#allocation7], 4
      %s127 = int_to_ptr.vmem [resolvable:$true] %s126
      %129 = dma.vmem_to_hbm [thread:$0]  %s127, 128, %s3, [#allocation4]
    $region25: #{tpu_custom_call.1} parent=1 // pred_fallthru
      _
    // Predicated region
    $region26: #{tpu_custom_call.1} parent=1 // pred_check
      _
    $region27: #{tpu_custom_call.1} parent=1 // pred_check_branch
      %131 = sbr.rel (0) target = $region29
    $region28: #{tpu_custom_call.1} parent=1 // pred_region
      %132 = dma.done [#allocation4], 128
    $region29: #{tpu_custom_call.1} parent=1 // pred_fallthru
      _
    %133 = vsyncpa [#allocation3], 1
    %134 = vsyncpa [#allocation6], 1
    %135 = vsyncpa [#allocation4], 1

</llo_original>
